<compile_context>
chip_gen: v6e
topology: v6e:2x2x1
jax: 0.10.0
libtpu: 0.0.40
codegen_flags: <defaults>
</compile_context>

<pallas_src>
import functools
import math

import jax
import jax.numpy as jnp
from jax.experimental import pallas as pl
from jax.experimental.pallas import tpu as pltpu


def _rmsnorm_kernel(x_ref, w_ref, o_ref, *, eps, inv_dim, chunk_rows, num_chunks):
    # Hoist the weight load out of the chunk loop (JAX does not CSE broadcasts).
    w = w_ref[...]  # (1, dim) float32

    def chunk(c, carry):
        r0 = pl.multiple_of(c * chunk_rows, chunk_rows)
        x = x_ref[pl.ds(r0, chunk_rows), :].astype(jnp.float32)   # x.float()
        ms = jnp.sum(x * x, axis=-1, keepdims=True) * inv_dim     # mean(x^2, -1)
        inv = jax.lax.rsqrt(ms + eps)                             # rsqrt(. + eps)
        # torch: _norm(x.float()).type_as(x) * weight   (bit-exact round-trip;
        # both casts are no-ops when x is already float32).
        normed = (x * inv).astype(x_ref.dtype)
        out = normed.astype(jnp.float32) * w
        o_ref[pl.ds(r0, chunk_rows), :] = out.astype(o_ref.dtype)
        return carry

    jax.lax.fori_loop(0, num_chunks, chunk, 0, unroll=True)


def _round_up(a, b):
    return ((a + b - 1) // b) * b


def _pick_tiles(rows, dim, in_bytes, out_bytes):
    """Pick (tile_rows, chunk_rows, vmem_cap) for the row-tiled grid."""
    # Sublane packing of the narrowest dtype: f32 -> 8, bf16 -> 16, int8 -> 32.
    sub = max(8, 32 // max(1, min(in_bytes, out_bytes)))
    try:
        vmem_cap = int(pltpu.get_tpu_info().vmem_capacity_bytes)
    except Exception:
        vmem_cap = 64 * 1024 * 1024  # v7x per-TC size: safe floor everywhere

    # Stay well under physical VMEM so Mosaic keeps room for its own scratch.
    budget = vmem_cap // 2

    # In-kernel chunk: bounds the live f32 temporaries (x.float(), normed, out)
    # to one chunk at a time regardless of the DMA tile size (~12 B/elem).
    chunk_rows = min(256, _round_up(rows, sub))
    chunk_rows = max(sub, (chunk_rows // sub) * sub)
    while chunk_rows > sub and chunk_rows * dim * 12 > budget // 2:
        chunk_rows = max(sub, (chunk_rows // 2 // sub) * sub)

    # VMEM accounting: double-buffered input + output DMA tiles (per row),
    # plus one chunk of f32 temporaries and the (tiny) weight block.
    per_row_dma = 2 * dim * (in_bytes + out_bytes)
    temp_bytes = chunk_rows * dim * 12 + 2 * dim * 4
    max_rows = max(chunk_rows, (budget - temp_bytes) // max(1, per_row_dma))

    tile = min(max_rows, 1024)                       # diminishing returns past ~1k rows
    # Keep >=4 grid blocks when rows allow, so v7x's two TensorCores (and
    # megacore) both get work; extra grid steps are ~free on single-TC chips.
    if rows > 4 * chunk_rows:
        tile = min(tile, _round_up((rows + 3) // 4, chunk_rows))
    tile = min(tile, _round_up(rows, chunk_rows))    # don't oversize tiny inputs
    tile = max(chunk_rows, (tile // chunk_rows) * chunk_rows)  # exact chunk multiple
    return tile, chunk_rows, vmem_cap


def rmsnorm_pallas(x, weight, eps=1e-5, out_dtype=None):
    """x: [..., dim] array, weight: [dim] float32 array.

    out_dtype=None keeps torch promotion semantics (bf16 x * f32 weight -> f32).
    Pass out_dtype=x.dtype for the bandwidth-saving narrow-output fast path.
    """
    orig_shape = x.shape
    dim = orig_shape[-1]
    rows = math.prod(orig_shape[:-1])

    if out_dtype is None:
        out_dtype = jnp.promote_types(x.dtype, weight.dtype)
    out_dtype = jnp.dtype(out_dtype)

    x2d = x.reshape(rows, dim)
    w2d = weight.astype(jnp.float32).reshape(1, dim)

    in_bytes = jnp.dtype(x.dtype).itemsize
    out_bytes = out_dtype.itemsize
    tile_rows, chunk_rows, vmem_cap = _pick_tiles(rows, dim, in_bytes, out_bytes)
    num_chunks = tile_rows // chunk_rows

    # Scoped VMEM follows the real footprint (+ headroom), not physical capacity.
    footprint = (2 * tile_rows * dim * (in_bytes + out_bytes)   # dbl-buffered I/O
                 + chunk_rows * dim * 12                         # live f32 temps
                 + 2 * dim * 4)                                  # weight block
    vmem_limit = min(int(vmem_cap * 0.9),
                     max(32 * 1024 * 1024, footprint + (8 << 20)))

    grid = (pl.cdiv(rows, tile_rows),)

    out = pl.pallas_call(
        functools.partial(
            _rmsnorm_kernel,
            eps=eps,
            inv_dim=1.0 / dim,
            chunk_rows=chunk_rows,
            num_chunks=num_chunks,
        ),
        out_shape=jax.ShapeDtypeStruct((rows, dim), out_dtype),
        grid_spec=pltpu.PrefetchScalarGridSpec(
            num_scalar_prefetch=0,
            grid=grid,
            in_specs=[
                pl.BlockSpec((tile_rows, dim), lambda i: (i, 0)),
                pl.BlockSpec((1, dim), lambda i: (0, 0)),
            ],
            out_specs=pl.BlockSpec((tile_rows, dim), lambda i: (i, 0)),
        ),
        compiler_params=pltpu.CompilerParams(
            # Rows are independent: shard the row axis across TCs where the
            # platform supports it (megacore / v7x dual-TC).
            dimension_semantics=("parallel",),
            vmem_limit_bytes=vmem_limit,
        ),
    )(x2d, w2d)

    return out.reshape(*orig_shape[:-1], dim)


def rmsnorm_ref(x, weight, eps=1e-5):
    xf = x.astype(jnp.float32)
    inv = jax.lax.rsqrt(jnp.mean(xf * xf, axis=-1, keepdims=True) + eps)
    normed = (xf * inv).astype(x.dtype)
    return normed.astype(jnp.float32) * weight.astype(jnp.float32)


if __name__ == "__main__":
    batch, seq, dim = 2, 8, 32

    key = jax.random.PRNGKey(0)
    kx, kw = jax.random.split(key)
    x = jax.random.normal(kx, (batch, seq, dim), dtype=jnp.float32)
    # Deterministic analog of the module's torch.randn(dim) parameter.
    weight = jax.random.normal(kw, (dim,), dtype=jnp.float32)

    out = jax.block_until_ready(rmsnorm_pallas(x, weight))

    ref = rmsnorm_ref(x, weight)
    assert out.shape == ref.shape and out.dtype == ref.dtype
    assert jnp.allclose(out, ref, atol=1e-5, rtol=1e-5)

    print("KERNEL_OK")
</pallas_src>

<mosaic_0001>
module attributes {stable_mosaic.version = 11 : i64} {
  func.func @_rmsnorm_kernel(%arg0: i32, %arg1: memref<16x32xf32, #tpu.memory_space<vmem>>, %arg2: memref<1x32xf32, #tpu.memory_space<vmem>>, %arg3: memref<16x32xf32, #tpu.memory_space<vmem>>) attributes {dimension_semantics = [#tpu.dimension_semantics<parallel>], iteration_bounds = array<i64: 1>, scalar_prefetch = 0 : i64, scratch_operands = 0 : i64, tpu.core_type = #tpu.core_type<tc>, window_params = [{transform_indices = @transform_0, window_bounds = array<i64: 16, 32>}, {pipeline_mode = #tpu.pipeline_mode<synchronous>, transform_indices = @transform_1, window_bounds = array<i64: 1, 32>}, {transform_indices = @transform_2, window_bounds = array<i64: 16, 32>}]} {
    %c0 = arith.constant 0 : index
    %c0_0 = arith.constant 0 : index
    %0 = vector.load %arg2[%c0, %c0_0] : memref<1x32xf32, #tpu.memory_space<vmem>>, vector<1x32xf32>
    %c0_i32 = arith.constant 0 : i32
    %c16_i32 = arith.constant 16 : i32
    %1 = arith.muli %c0_i32, %c16_i32 : i32
    %2 = tpu.assume_multiple %1, 16 : i32
    %3 = arith.index_cast %2 : i32 to index
    %c0_1 = arith.constant 0 : index
    %4 = vector.load %arg1[%3, %c0_1] : memref<16x32xf32, #tpu.memory_space<vmem>>, vector<16x32xf32>
    %5 = arith.mulf %4, %4 : vector<16x32xf32>
    %cst = arith.constant dense<0.000000e+00> : vector<16xf32>
    %6 = vector.multi_reduction <add>, %5, %cst [1] : vector<16x32xf32> to vector<16xf32>
    %7 = vector.shape_cast %6 : vector<16xf32> to vector<16x1xf32>
    %cst_2 = arith.constant 3.125000e-02 : f32
    %8 = vector.broadcast %cst_2 : f32 to vector<16x1xf32>
    %9 = arith.mulf %7, %8 : vector<16x1xf32>
    %cst_3 = arith.constant 9.99999974E-6 : f32
    %10 = vector.broadcast %cst_3 : f32 to vector<16x1xf32>
    %11 = arith.addf %9, %10 : vector<16x1xf32>
    %12 = math.rsqrt %11 : vector<16x1xf32>
    %13 = vector.broadcast %12 : vector<16x1xf32> to vector<16x32xf32>
    %14 = arith.mulf %4, %13 : vector<16x32xf32>
    %15 = vector.broadcast %0 : vector<1x32xf32> to vector<16x32xf32>
    %16 = arith.mulf %14, %15 : vector<16x32xf32>
    %17 = arith.index_cast %2 : i32 to index
    %c0_4 = arith.constant 0 : index
    %18 = vector.load %arg3[%17, %c0_4] : memref<16x32xf32, #tpu.memory_space<vmem>>, vector<16x32xf32>
    tpu.vector_store %arg3[%17, %c0_4], %16 {strides = array<i32>} : memref<16x32xf32, #tpu.memory_space<vmem>>, vector<16x32xf32>,
    %c1_i32 = arith.constant 1 : i32
    return
  }
  func.func @transform_0(%arg0: i32) -> (i32, i32) {
    %c0_i32 = arith.constant 0 : i32
    %c0_i32_0 = arith.constant 0 : i32
    return %arg0, %c0_i32 : i32, i32
  }
  func.func @transform_1(%arg0: i32) -> (i32, i32) {
    %c0_i32 = arith.constant 0 : i32
    %c0_i32_0 = arith.constant 0 : i32
    %c0_i32_1 = arith.constant 0 : i32
    return %c0_i32, %c0_i32_0 : i32, i32
  }
  func.func @transform_2(%arg0: i32) -> (i32, i32) {
    %c0_i32 = arith.constant 0 : i32
    %c0_i32_0 = arith.constant 0 : i32
    return %arg0, %c0_i32 : i32, i32
  }
}

</mosaic_0001>

<llo_original>
// kernel: tpu_custom_call.1
$region0: #{tpu_custom_call.1}
  #allocation0 [shape = 'u32[]', space=smem, size = 0x4, offset = 0x4, fixed_abs, tag = 'smem constant byte address 0x4 - core index']
  #allocation1 [shape = 'u32[144,128]{1,0:T(1,128)}', space=vmem, size = 0x12000, scoped, tag = 'internal scratch']
  %s0 = inlined_call_operand.hbm [shape: f32[16,32], index: 0, kind: input, shape index: {}]
  %s1 = inlined_call_operand.vmem [shape: f32[1,32], index: 1, kind: input, shape index: {}]
  %s2 = inlined_call_operand.hbm [shape: f32[16,32], index: 2, kind: output, shape index: {}]
  %s3 = sld [smem:[#allocation0]]
  $region22: #{tpu_custom_call.1} parent=0
    _
  %s5 = ssub.s32 1, %s3
  %s6 = scalar_select 0, %s5, %s3
  $region1: #{tpu_custom_call.1} parent=0
    #allocation2 [shape = 'u8[8192]{0}', space=vmem, size = 0x2000, scoped, tag = 'input window, operand 0, single buffered']
    #allocation3 [shape = 's32[1]{0}', space=sflag, size = 0x4, scoped, tag = 'scoped memory for tpu_custom_call.1']
    #allocation4 [shape = 's32[1]{0}', space=sflag, size = 0x4, scoped, tag = 'scoped memory for tpu_custom_call.1']
    #allocation5 [shape = 'u8[8192]{0}', space=vmem, size = 0x2000, scoped, tag = 'output window, operand 0, single buffered']
    %7 = vsyncpa [#allocation3], 0
    %8 = vsyncpa [#allocation4], 0
    // Predicated region
    $region2: #{tpu_custom_call.1} parent=1 // pred_check
      _
    $region3: #{tpu_custom_call.1} parent=1 // pred_check_branch
      %10 = sbr.rel (0) target = $region5
    $region4: #{tpu_custom_call.1} parent=1 // pred_region
      %s12 = ssub.s32 256, 256
      %13 = vsyncadd [#allocation3], %s12
      %s14 = sshll.u32 [#allocation2], 4
      %s15 = int_to_ptr.vmem [resolvable:$true] %s14
      %20 = dma.hbm_to_vmem [thread:$0]  %s0, 256, %s15, [#allocation3], 128, 128, 8
    $region5: #{tpu_custom_call.1} parent=1 // pred_fallthru
      _
    // Predicated region
    $region6: #{tpu_custom_call.1} parent=1 // pred_check
      _
    $region7: #{tpu_custom_call.1} parent=1 // pred_check_branch
      %22 = sbr.rel (0) target = $region9
    $region8: #{tpu_custom_call.1} parent=1 // pred_region
      _
    $region9: #{tpu_custom_call.1} parent=1 // pred_fallthru
      _
    // Predicated region
    $region10: #{tpu_custom_call.1} parent=1 // pred_check
      _
    $region11: #{tpu_custom_call.1} parent=1 // pred_check_branch
      %24 = sbr.rel (0) target = $region13
    $region12: #{tpu_custom_call.1} parent=1 // pred_region
      %25 = dma.done [#allocation3], 256
    $region13: #{tpu_custom_call.1} parent=1 // pred_fallthru
      _
    %v26 = vld [vmem:[%s1] sm:$0x1]
    %v27 = vld [vmem:[#allocation2] sm:$0xff]
    %v28 = vld [vmem:[#allocation2 + $0x8] sm:$0xff]
    %v29 = vmul.f32 %v27, %v27
    %v30 = vmul.f32 %v28, %v28
    %vm31 = vcmask 261120
    %v32 = vsel %vm31, %v29, 0.0
    %33 = vadd.xlane.f32.xlu0 %v32
    %v34 = vpop.xlane.xlu0 %33
    %v35 = vsel %vm31, %v30, 0.0
    %36 = vadd.xlane.f32.xlu0 %v35
    %v37 = vpop.xlane.xlu0 %36
    %v38 = vmul.f32 %v34, 0.03125
    %v39 = vmul.f32 %v37, 0.03125
    %v40 = vadd.f32 %v38, 1e-05
    %v41 = vadd.f32 %v39, 1e-05
    %v42 = vrsqrt.pop %v40
    %v43 = vrsqrt.pop %v41
    %v44 = vmul.f32 %v27, %v42
    %v45 = vmul.f32 %v28, %v43
    %v47 = vlaneseq
    %v48 = vshrl.u32 %v47, 7
    %v49 = vsub.s32 0, %v48
    %v50 = vrot.slane %v26, %v49
    %v52 = vmul.f32 %v44, %v50
    %v53 = vmul.f32 %v45, %v50
    %54 = vst.msk [vmem:[#allocation5] sm:$0xff] %vm31, %v52
    %55 = vst.msk [vmem:[#allocation5 + $0x8] sm:$0xff] %vm31, %v53
    // Predicated region
    $region14: #{tpu_custom_call.1} parent=1 // pred_check
      _
    $region15: #{tpu_custom_call.1} parent=1 // pred_check_branch
      %57 = sbr.rel (0) target = $region17
    $region16: #{tpu_custom_call.1} parent=1 // pred_region
      %s59 = ssub.s32 256, 256
      %60 = vsyncadd [#allocation4], %s59
      %s61 = sshll.u32 [#allocation5], 4
      %s62 = int_to_ptr.vmem [resolvable:$true] %s61
      %67 = dma.vmem_to_hbm [thread:$0]  %s62, 256, %s2, [#allocation4], 128, 128, 8
    $region17: #{tpu_custom_call.1} parent=1 // pred_fallthru
      _
    // Predicated region
    $region18: #{tpu_custom_call.1} parent=1 // pred_check
      _
    $region19: #{tpu_custom_call.1} parent=1 // pred_check_branch
      %69 = sbr.rel (0) target = $region21
    $region20: #{tpu_custom_call.1} parent=1 // pred_region
      %70 = dma.done [#allocation4], 256
    $region21: #{tpu_custom_call.1} parent=1 // pred_fallthru
      _
    %71 = vsyncpa [#allocation3], 1
    %72 = vsyncpa [#allocation4], 1

</llo_original>
